<compile_context>
chip_gen: v6e
topology: v6e:2x2x1
jax: 0.10.0
libtpu: 0.0.40
codegen_flags: <defaults>
</compile_context>

<pallas_src>
import math

import jax
import jax.numpy as jnp
from jax.experimental import pallas as pl
from jax.experimental.pallas import tpu as pltpu


def _gcn_fused_kernel(x_ref, adj_ref,
                      w1_ref, s1_ref, t1_ref,
                      w2_ref, s2_ref, t2_ref,
                      o_ref):
    # x_ref:   (block_b, Np, Cin)   adj_ref: (block_b, Np, Np)
    # w1_ref:  (Cin, H) bf16        s1/t1:   (Np, H) f32 (gc1 bias folded in t1)
    # w2_ref:  (H,  H)  bf16        s2/t2:   (Np, H) f32 (gc2 bias folded in t2)
    # o_ref:   (block_b, Np, H) f32
    block_b, n_pad, cin = x_ref.shape
    h_dim = w1_ref.shape[1]
    mxu_dtype = w1_ref.dtype

    # Grid-invariant operands (constant index maps): loaded once per step.
    w1 = w1_ref[...]
    w2 = w2_ref[...]
    s1 = s1_ref[...]
    t1 = t1_ref[...]
    s2 = s2_ref[...]
    t2 = t2_ref[...]
    adj = adj_ref[...].astype(mxu_dtype)                      # (bB, Np, Np)

    # ---- layer 1: relu( BN( adj @ (x @ W1) + b1 ) ); bias+BN folded in s1/t1.
    # One flattened 2-D dot for the whole block (M = block_b*Np, tile aligned).
    x2d = x_ref[...].reshape(block_b * n_pad, cin).astype(mxu_dtype)
    h = jnp.dot(x2d, w1, preferred_element_type=jnp.float32)  # (bB*Np, H) f32
    h = h.reshape(block_b, n_pad, h_dim)
    g = jnp.einsum("bnm,bmh->bnh", adj, h.astype(mxu_dtype),
                   preferred_element_type=jnp.float32)        # (bB, Np, H)
    g = jnp.maximum(g * s1 + t1, 0.0)                         # f32 VPU path

    # dropout(p=0.5) is the identity in eval mode.

    # ---- layer 2: relu( BN( adj @ (g @ W2) + b2 ) ); bias+BN folded in s2/t2.
    g2d = g.reshape(block_b * n_pad, h_dim).astype(mxu_dtype)
    h = jnp.dot(g2d, w2, preferred_element_type=jnp.float32)  # (bB*Np, H) f32
    h = h.reshape(block_b, n_pad, h_dim)
    g = jnp.einsum("bnm,bmh->bnh", adj, h.astype(mxu_dtype),
                   preferred_element_type=jnp.float32)
    g = jnp.maximum(g * s2 + t2, 0.0)

    # Single full-tile store for the whole block.
    o_ref[...] = g.astype(o_ref.dtype)


def _num_tensorcores_per_chip():
    """Best-effort TensorCore count per chip (safe default: 1)."""
    try:
        kind = jax.devices()[0].device_kind.lower()
    except Exception:
        return 1
    # Single-TC generations first (their names can contain 'v5'/'v6').
    if any(s in kind for s in ("lite", "v5e", "v6e", "v6")):
        return 1
    # Megacore (v4 / v5p) and v7x share one grid's "parallel" axes over 2 TCs.
    if any(s in kind for s in ("v4", "v5p", "v7", "7x")):
        return 2
    return 1


def _choose_block_b(batch, per_elem_bytes, *, num_tc=1, max_block=256,
                    vmem_budget_bytes=8 << 20):
    """Per-grid-step batch block.

    Fewest, fattest steps: per-step overhead (~0.35 us) dominates at these
    tiny per-element shapes, so single-TC chips (v5e / v6e) get one block
    covering the whole batch whenever it fits the budget.  On 2-TC chips the
    grid is split in two only once each half still carries >= 64 elements.
    The cap keeps the double-buffered x+adj+out footprint well under every
    generation's scoped VMEM (v7x is the tightest), and max_block=256 bounds
    in-kernel value/vreg pressure and unrolled instruction count.
    """
    cap = max(1, min(max_block, vmem_budget_bytes // (2 * per_elem_bytes)))
    if num_tc >= 2 and batch >= 128:
        return min(cap, (batch + 1) // 2)
    return min(cap, batch)


def gcn_forward(x, adj, params_gc1, params_gc2, *, block_b=None,
                mxu_dtype=jnp.bfloat16):
    """Fused relu(gc2(relu(gc1(x, adj)), adj)) on TPU via one pallas_call."""
    B, N, Cin = x.shape
    w1, s1, t1 = params_gc1
    w2, s2, t2 = params_gc2
    H = w1.shape[1]
    assert w2.shape == (H, H)
    assert adj.shape == (B, N, N)
    assert s1.shape == t1.shape == (N, H) and s2.shape == t2.shape == (N, H)

    # Pad the node axis up to a multiple of 8 (sublane tile) so the in-kernel
    # (bB, Np, C) <-> (bB*Np, C) reshapes are tile-aligned and the flattened
    # matmul M-dim is sublane-aligned.  Zero rows in x/adj never contaminate
    # real rows (adj zeros annihilate them) and are sliced away at the end.
    n_pad = max(8, ((N + 7) // 8) * 8)
    if n_pad != N:
        dn = n_pad - N
        x = jnp.pad(x, ((0, 0), (0, dn), (0, 0)))
        adj = jnp.pad(adj, ((0, 0), (0, dn), (0, dn)))
        s1 = jnp.pad(s1, ((0, dn), (0, 0)))
        t1 = jnp.pad(t1, ((0, dn), (0, 0)))
        s2 = jnp.pad(s2, ((0, dn), (0, 0)))
        t2 = jnp.pad(t2, ((0, dn), (0, 0)))

    # One-time weight cast for the MXU (bf16 native on v6e/v7x; halves operand
    # DMA).  Activations are cast in-kernel; accumulation / BN / ReLU in f32.
    w1 = w1.astype(mxu_dtype)
    w2 = w2.astype(mxu_dtype)

    per_elem_bytes = 4 * (n_pad * Cin + n_pad * n_pad + n_pad * H)
    if block_b is None:
        block_b = _choose_block_b(B, per_elem_bytes,
                                  num_tc=_num_tensorcores_per_chip())
    num_blocks = pl.cdiv(B, block_b)
    b_pad = num_blocks * block_b
    if b_pad != B:
        db = b_pad - B
        x = jnp.pad(x, ((0, db), (0, 0), (0, 0)))
        adj = jnp.pad(adj, ((0, db), (0, 0), (0, 0)))

    out = pl.pallas_call(
        _gcn_fused_kernel,
        out_shape=jax.ShapeDtypeStruct((b_pad, n_pad, H), jnp.float32),
        grid=(num_blocks,),
        in_specs=[
            pl.BlockSpec((block_b, n_pad, Cin), lambda i: (i, 0, 0)),
            pl.BlockSpec((block_b, n_pad, n_pad), lambda i: (i, 0, 0)),
            # Grid-invariant parameters (constant index maps).
            pl.BlockSpec((Cin, H), lambda i: (0, 0)),
            pl.BlockSpec((n_pad, H), lambda i: (0, 0)),
            pl.BlockSpec((n_pad, H), lambda i: (0, 0)),
            pl.BlockSpec((H, H), lambda i: (0, 0)),
            pl.BlockSpec((n_pad, H), lambda i: (0, 0)),
            pl.BlockSpec((n_pad, H), lambda i: (0, 0)),
        ],
        out_specs=pl.BlockSpec((block_b, n_pad, H), lambda i: (i, 0, 0)),
        compiler_params=pltpu.CompilerParams(
            dimension_semantics=("parallel",)),
    )(x, adj, w1, s1, t1, w2, s2, t2)

    return out[:B, :N, :]


def init_graph_conv_params(key, in_features, out_features, adj_size):
    """Mirrors GraphConvolution.__init__ / reset_parameters + BatchNorm1d
    (eval mode), with the conv bias folded into the BN shift."""
    stdv = 1.0 / math.sqrt(out_features)
    kw, kb = jax.random.split(key)
    w = jax.random.uniform(kw, (in_features, out_features), jnp.float32,
                           minval=-stdv, maxval=stdv)
    b = jax.random.uniform(kb, (out_features,), jnp.float32,
                           minval=-stdv, maxval=stdv)
    # BatchNorm1d(out_features * adj_size) PyTorch defaults (eval mode):
    # gamma = 1, beta = 0, running_mean = 0, running_var = 1, eps = 1e-5.
    nfeat_bn = adj_size * out_features
    gamma = jnp.ones((nfeat_bn,), jnp.float32)
    beta = jnp.zeros((nfeat_bn,), jnp.float32)
    running_mean = jnp.zeros((nfeat_bn,), jnp.float32)
    running_var = jnp.ones((nfeat_bn,), jnp.float32)
    eps = 1e-5
    inv_std = gamma / jnp.sqrt(running_var + eps)
    # Flattened BN feature index is n*C_out + c, so reshape to (N, C_out).
    scale = inv_std.reshape(adj_size, out_features)
    shift = (beta - running_mean * inv_std).reshape(adj_size, out_features)
    # Fold the GraphConvolution bias into the BN shift:
    #   (out + b) * scale + shift == out * scale + (b * scale + shift)
    shift = shift + b[None, :] * scale
    return w, scale, shift


def _reference_forward(x, adj, params_gc1, params_gc2):
    """Plain-JAX f32 reference of the same eval-mode forward."""
    def layer(xx, p):
        w, scale, shift = p
        support = jnp.einsum("bnc,cd->bnd", xx, w)
        out = jnp.einsum("bnm,bmd->bnd", adj, support)
        out = out * scale[None] + shift[None]
        return jnp.maximum(out, 0.0)
    return layer(layer(x, params_gc1), params_gc2)


if __name__ == "__main__":
    # Small shapes consistent with the module: adj_size=9 nodes, nfeat=16, nhid=32.
    B, ADJ_SIZE, NFEAT, NHID = 2, 9, 16, 32

    key = jax.random.PRNGKey(0)
    kx, ka, k1, k2 = jax.random.split(key, 4)

    x = jax.random.normal(kx, (B, ADJ_SIZE, NFEAT), jnp.float32)
    # Row-normalized random adjacency (batched), like a normalized graph adj.
    adj_raw = jax.random.uniform(ka, (B, ADJ_SIZE, ADJ_SIZE), jnp.float32)
    adj = adj_raw / jnp.sum(adj_raw, axis=-1, keepdims=True)

    params_gc1 = init_graph_conv_params(k1, NFEAT, NHID, ADJ_SIZE)
    params_gc2 = init_graph_conv_params(k2, NHID, NHID, ADJ_SIZE)

    out = gcn_forward(x, adj, params_gc1, params_gc2)
    out = jax.block_until_ready(out)

    ref = _reference_forward(x, adj, params_gc1, params_gc2)
    assert out.shape == (B, ADJ_SIZE, NHID)
    # bf16 MXU operands vs. f32 reference -> loose but meaningful tolerance.
    assert jnp.allclose(out, ref, atol=5e-2, rtol=5e-2), "mismatch vs reference"

    print("KERNEL_OK")
</pallas_src>

<mosaic_0001>
module attributes {stable_mosaic.version = 11 : i64} {
  func.func @_gcn_fused_kernel(%arg0: i32, %arg1: memref<2x16x16xf32, #tpu.memory_space<vmem>>, %arg2: memref<2x16x16xf32, #tpu.memory_space<vmem>>, %arg3: memref<16x32xbf16, #tpu.memory_space<vmem>>, %arg4: memref<16x32xf32, #tpu.memory_space<vmem>>, %arg5: memref<16x32xf32, #tpu.memory_space<vmem>>, %arg6: memref<32x32xbf16, #tpu.memory_space<vmem>>, %arg7: memref<16x32xf32, #tpu.memory_space<vmem>>, %arg8: memref<16x32xf32, #tpu.memory_space<vmem>>, %arg9: memref<2x16x32xf32, #tpu.memory_space<vmem>>) attributes {dimension_semantics = [#tpu.dimension_semantics<parallel>], iteration_bounds = array<i64: 1>, scalar_prefetch = 0 : i64, scratch_operands = 0 : i64, tpu.core_type = #tpu.core_type<tc>, window_params = [{transform_indices = @transform_0, window_bounds = array<i64: 2, 16, 16>}, {transform_indices = @transform_1, window_bounds = array<i64: 2, 16, 16>}, {pipeline_mode = #tpu.pipeline_mode<synchronous>, transform_indices = @transform_2, window_bounds = array<i64: 16, 32>}, {pipeline_mode = #tpu.pipeline_mode<synchronous>, transform_indices = @transform_3, window_bounds = array<i64: 16, 32>}, {pipeline_mode = #tpu.pipeline_mode<synchronous>, transform_indices = @transform_4, window_bounds = array<i64: 16, 32>}, {pipeline_mode = #tpu.pipeline_mode<synchronous>, transform_indices = @transform_5, window_bounds = array<i64: 32, 32>}, {pipeline_mode = #tpu.pipeline_mode<synchronous>, transform_indices = @transform_6, window_bounds = array<i64: 16, 32>}, {pipeline_mode = #tpu.pipeline_mode<synchronous>, transform_indices = @transform_7, window_bounds = array<i64: 16, 32>}, {transform_indices = @transform_8, window_bounds = array<i64: 2, 16, 32>}]} {
    %c0 = arith.constant 0 : index
    %c0_0 = arith.constant 0 : index
    %0 = vector.load %arg3[%c0, %c0_0] : memref<16x32xbf16, #tpu.memory_space<vmem>>, vector<16x32xbf16>
    %c0_1 = arith.constant 0 : index
    %c0_2 = arith.constant 0 : index
    %1 = vector.load %arg6[%c0_1, %c0_2] : memref<32x32xbf16, #tpu.memory_space<vmem>>, vector<32x32xbf16>
    %c0_3 = arith.constant 0 : index
    %c0_4 = arith.constant 0 : index
    %2 = vector.load %arg4[%c0_3, %c0_4] : memref<16x32xf32, #tpu.memory_space<vmem>>, vector<16x32xf32>
    %c0_5 = arith.constant 0 : index
    %c0_6 = arith.constant 0 : index
    %3 = vector.load %arg5[%c0_5, %c0_6] : memref<16x32xf32, #tpu.memory_space<vmem>>, vector<16x32xf32>
    %c0_7 = arith.constant 0 : index
    %c0_8 = arith.constant 0 : index
    %4 = vector.load %arg7[%c0_7, %c0_8] : memref<16x32xf32, #tpu.memory_space<vmem>>, vector<16x32xf32>
    %c0_9 = arith.constant 0 : index
    %c0_10 = arith.constant 0 : index
    %5 = vector.load %arg8[%c0_9, %c0_10] : memref<16x32xf32, #tpu.memory_space<vmem>>, vector<16x32xf32>
    %c0_11 = arith.constant 0 : index
    %c0_12 = arith.constant 0 : index
    %c0_13 = arith.constant 0 : index
    %6 = vector.load %arg2[%c0_11, %c0_12, %c0_13] : memref<2x16x16xf32, #tpu.memory_space<vmem>>, vector<2x16x16xf32>
    %7 = arith.truncf %6 : vector<2x16x16xf32> to vector<2x16x16xbf16>
    %c0_14 = arith.constant 0 : index
    %c0_15 = arith.constant 0 : index
    %c0_16 = arith.constant 0 : index
    %8 = vector.load %arg1[%c0_14, %c0_15, %c0_16] : memref<2x16x16xf32, #tpu.memory_space<vmem>>, vector<2x16x16xf32>
    %9 = vector.shape_cast %8 : vector<2x16x16xf32> to vector<32x16xf32>
    %10 = arith.truncf %9 : vector<32x16xf32> to vector<32x16xbf16>
    %cst = arith.constant dense<0.000000e+00> : vector<32x32xf32>
    %11 = tpu.matmul %10, %0, %cst {dimension_numbers = #tpu.dot_dimension_numbers<[1], [0], [0], [1], [0, 0, 1, 1], [], []>} : vector<32x16xbf16>, vector<16x32xbf16>, vector<32x32xf32> -> vector<32x32xf32>
    %12 = vector.shape_cast %11 : vector<32x32xf32> to vector<2x16x32xf32>
    %13 = arith.truncf %12 : vector<2x16x32xf32> to vector<2x16x32xbf16>
    "tpu.trace_start"() <{level = 10 : i32, message = "bnm,bmh->bnh"}> : () -> ()
    %cst_17 = arith.constant dense<0.000000e+00> : vector<2x16x32xf32>
    %14 = tpu.matmul %7, %13, %cst_17 {dimension_numbers = #tpu.dot_dimension_numbers<[2], [1], [1], [2], [0, 0, 0, 1, 1, 2], [0], [0]>} : vector<2x16x16xbf16>, vector<2x16x32xbf16>, vector<2x16x32xf32> -> vector<2x16x32xf32>
    "tpu.trace_stop"() : () -> ()
    %15 = vector.shape_cast %2 : vector<16x32xf32> to vector<1x16x32xf32>
    %16 = vector.broadcast %15 : vector<1x16x32xf32> to vector<2x16x32xf32>
    %17 = arith.mulf %14, %16 : vector<2x16x32xf32>
    %18 = vector.shape_cast %3 : vector<16x32xf32> to vector<1x16x32xf32>
    %19 = vector.broadcast %18 : vector<1x16x32xf32> to vector<2x16x32xf32>
    %20 = arith.addf %17, %19 : vector<2x16x32xf32>
    %cst_18 = arith.constant 0.000000e+00 : f32
    %21 = vector.broadcast %cst_18 : f32 to vector<2x16x32xf32>
    %22 = arith.maximumf %20, %21 : vector<2x16x32xf32>
    %23 = vector.shape_cast %22 : vector<2x16x32xf32> to vector<32x32xf32>
    %24 = arith.truncf %23 : vector<32x32xf32> to vector<32x32xbf16>
    %cst_19 = arith.constant dense<0.000000e+00> : vector<32x32xf32>
    %25 = tpu.matmul %24, %1, %cst_19 {dimension_numbers = #tpu.dot_dimension_numbers<[1], [0], [0], [1], [0, 0, 1, 1], [], []>} : vector<32x32xbf16>, vector<32x32xbf16>, vector<32x32xf32> -> vector<32x32xf32>
    %26 = vector.shape_cast %25 : vector<32x32xf32> to vector<2x16x32xf32>
    %27 = arith.truncf %26 : vector<2x16x32xf32> to vector<2x16x32xbf16>
    "tpu.trace_start"() <{level = 10 : i32, message = "bnm,bmh->bnh"}> : () -> ()
    %cst_20 = arith.constant dense<0.000000e+00> : vector<2x16x32xf32>
    %28 = tpu.matmul %7, %27, %cst_20 {dimension_numbers = #tpu.dot_dimension_numbers<[2], [1], [1], [2], [0, 0, 0, 1, 1, 2], [0], [0]>} : vector<2x16x16xbf16>, vector<2x16x32xbf16>, vector<2x16x32xf32> -> vector<2x16x32xf32>
    "tpu.trace_stop"() : () -> ()
    %29 = vector.shape_cast %4 : vector<16x32xf32> to vector<1x16x32xf32>
    %30 = vector.broadcast %29 : vector<1x16x32xf32> to vector<2x16x32xf32>
    %31 = arith.mulf %28, %30 : vector<2x16x32xf32>
    %32 = vector.shape_cast %5 : vector<16x32xf32> to vector<1x16x32xf32>
    %33 = vector.broadcast %32 : vector<1x16x32xf32> to vector<2x16x32xf32>
    %34 = arith.addf %31, %33 : vector<2x16x32xf32>
    %cst_21 = arith.constant 0.000000e+00 : f32
    %35 = vector.broadcast %cst_21 : f32 to vector<2x16x32xf32>
    %36 = arith.maximumf %34, %35 : vector<2x16x32xf32>
    %c0_22 = arith.constant 0 : index
    %c0_23 = arith.constant 0 : index
    %c0_24 = arith.constant 0 : index
    %37 = vector.load %arg9[%c0_22, %c0_23, %c0_24] : memref<2x16x32xf32, #tpu.memory_space<vmem>>, vector<2x16x32xf32>
    tpu.vector_store %arg9[%c0_22, %c0_23, %c0_24], %36 {strides = array<i32>} : memref<2x16x32xf32, #tpu.memory_space<vmem>>, vector<2x16x32xf32>,
    return
  }
  func.func @transform_0(%arg0: i32) -> (i32, i32, i32) {
    %c0_i32 = arith.constant 0 : i32
    %c0_i32_0 = arith.constant 0 : i32
    %c0_i32_1 = arith.constant 0 : i32
    return %arg0, %c0_i32, %c0_i32_0 : i32, i32, i32
  }
  func.func @transform_1(%arg0: i32) -> (i32, i32, i32) {
    %c0_i32 = arith.constant 0 : i32
    %c0_i32_0 = arith.constant 0 : i32
    %c0_i32_1 = arith.constant 0 : i32
    return %arg0, %c0_i32, %c0_i32_0 : i32, i32, i32
  }
  func.func @transform_2(%arg0: i32) -> (i32, i32) {
    %c0_i32 = arith.constant 0 : i32
    %c0_i32_0 = arith.constant 0 : i32
    %c0_i32_1 = arith.constant 0 : i32
    return %c0_i32, %c0_i32_0 : i32, i32
  }
  func.func @transform_3(%arg0: i32) -> (i32, i32) {
    %c0_i32 = arith.constant 0 : i32
    %c0_i32_0 = arith.constant 0 : i32
    %c0_i32_1 = arith.constant 0 : i32
    return %c0_i32, %c0_i32_0 : i32, i32
  }
  func.func @transform_4(%arg0: i32) -> (i32, i32) {
    %c0_i32 = arith.constant 0 : i32
    %c0_i32_0 = arith.constant 0 : i32
    %c0_i32_1 = arith.constant 0 : i32
    return %c0_i32, %c0_i32_0 : i32, i32
  }
  func.func @transform_5(%arg0: i32) -> (i32, i32) {
    %c0_i32 = arith.constant 0 : i32
    %c0_i32_0 = arith.constant 0 : i32
    %c0_i32_1 = arith.constant 0 : i32
    return %c0_i32, %c0_i32_0 : i32, i32
  }
  func.func @transform_6(%arg0: i32) -> (i32, i32) {
    %c0_i32 = arith.constant 0 : i32
    %c0_i32_0 = arith.constant 0 : i32
    %c0_i32_1 = arith.constant 0 : i32
    return %c0_i32, %c0_i32_0 : i32, i32
  }
  func.func @transform_7(%arg0: i32) -> (i32, i32) {
    %c0_i32 = arith.constant 0 : i32
    %c0_i32_0 = arith.constant 0 : i32
    %c0_i32_1 = arith.constant 0 : i32
    return %c0_i32, %c0_i32_0 : i32, i32
  }
  func.func @transform_8(%arg0: i32) -> (i32, i32, i32) {
    %c0_i32 = arith.constant 0 : i32
    %c0_i32_0 = arith.constant 0 : i32
    %c0_i32_1 = arith.constant 0 : i32
    return %arg0, %c0_i32, %c0_i32_0 : i32, i32, i32
  }
}

</mosaic_0001>

<llo_original>
// kernel: tpu_custom_call.1
$region0: #{tpu_custom_call.1}
  #allocation0 [shape = 'u32[]', space=smem, size = 0x4, offset = 0x4, fixed_abs, tag = 'smem constant byte address 0x4 - core index']
  #allocation1 [shape = 'u32[144,128]{1,0:T(1,128)}', space=vmem, size = 0x12000, scoped, tag = 'internal scratch']
  %s0 = inlined_call_operand.hbm [shape: f32[2,16,16], index: 0, kind: input, shape index: {}]
  %s1 = inlined_call_operand.hbm [shape: f32[2,16,16], index: 1, kind: input, shape index: {}]
  %s2 = inlined_call_operand.hbm [shape: bf16[16,32], index: 2, kind: input, shape index: {}]
  %s3 = inlined_call_operand.hbm [shape: f32[16,32], index: 3, kind: input, shape index: {}]
  %s4 = inlined_call_operand.hbm [shape: f32[16,32], index: 4, kind: input, shape index: {}]
  %s5 = inlined_call_operand.hbm [shape: bf16[32,32], index: 5, kind: input, shape index: {}]
  %s6 = inlined_call_operand.hbm [shape: f32[16,32], index: 6, kind: input, shape index: {}]
  %s7 = inlined_call_operand.hbm [shape: f32[16,32], index: 7, kind: input, shape index: {}]
  %s8 = inlined_call_operand.hbm [shape: f32[2,16,32], index: 8, kind: output, shape index: {}]
  %s9 = sld [smem:[#allocation0]]
  $region74: #{tpu_custom_call.1} parent=0
    _
  %s11 = ssub.s32 1, %s9
  %s12 = scalar_select 0, %s11, %s9
  $region1: #{tpu_custom_call.1} parent=0
    #allocation2 [shape = 'u8[16384]{0}', space=vmem, size = 0x4000, scoped, tag = 'input window, operand 0, single buffered']
    #allocation3 [shape = 's32[1]{0}', space=sflag, size = 0x4, scoped, tag = 'scoped memory for tpu_custom_call.1']
    #allocation4 [shape = 's32[1]{0}', space=sflag, size = 0x4, scoped, tag = 'scoped memory for tpu_custom_call.1']
    #allocation5 [shape = 'u8[16384]{0}', space=vmem, size = 0x4000, scoped, tag = 'input window, operand 1, single buffered']
    #allocation6 [shape = 's32[1]{0}', space=sflag, size = 0x4, scoped, tag = 'scoped memory for tpu_custom_call.1']
    #allocation7 [shape = 'u8[4096]{0}', space=vmem, size = 0x1000, scoped, tag = 'input window, operand 2, single buffered']
    #allocation8 [shape = 'u8[8192]{0}', space=vmem, size = 0x2000, scoped, tag = 'input window, operand 3, single buffered']
    #allocation9 [shape = 's32[1]{0}', space=sflag, size = 0x4, scoped, tag = 'scoped memory for tpu_custom_call.1']
    #allocation10 [shape = 'u8[8192]{0}', space=vmem, size = 0x2000, scoped, tag = 'input window, operand 4, single buffered']
    #allocation11 [shape = 'u8[8192]{0}', space=vmem, size = 0x2000, scoped, tag = 'input window, operand 5, single buffered']
    #allocation12 [shape = 's32[1]{0}', space=sflag, size = 0x4, scoped, tag = 'scoped memory for tpu_custom_call.1']
    #allocation13 [shape = 'u8[8192]{0}', space=vmem, size = 0x2000, scoped, tag = 'input window, operand 6, single buffered']
    #allocation14 [shape = 'u8[8192]{0}', space=vmem, size = 0x2000, scoped, tag = 'input window, operand 7, single buffered']
    #allocation15 [shape = 's32[1]{0}', space=sflag, size = 0x4, scoped, tag = 'scoped memory for tpu_custom_call.1']
    #allocation16 [shape = 'u8[16384]{0}', space=vmem, size = 0x4000, scoped, tag = 'output window, operand 0, single buffered']
    %13 = vsyncpa [#allocation3], 0
    %14 = vsyncpa [#allocation6], 0
    %15 = vsyncpa [#allocation9], 0
    %16 = vsyncpa [#allocation12], 0
    %17 = vsyncpa [#allocation15], 0
    %18 = vsyncpa [#allocation4], 0
    // Predicated region
    $region2: #{tpu_custom_call.1} parent=1 // pred_check
      _
    $region3: #{tpu_custom_call.1} parent=1 // pred_check_branch
      %20 = sbr.rel (0) target = $region5
    $region4: #{tpu_custom_call.1} parent=1 // pred_region
      %s22 = ssub.s32 512, 512
      %23 = vsyncadd [#allocation3], %s22
      %s24 = sshll.u32 [#allocation2], 4
      %s25 = int_to_ptr.vmem [resolvable:$true] %s24
      %30 = dma.hbm_to_vmem [thread:$0]  %s0, 512, %s25, [#allocation3], 128, 128, 8
    $region5: #{tpu_custom_call.1} parent=1 // pred_fallthru
      _
    // Predicated region
    $region6: #{tpu_custom_call.1} parent=1 // pred_check
      _
    $region7: #{tpu_custom_call.1} parent=1 // pred_check_branch
      %32 = sbr.rel (0) target = $region9
    $region8: #{tpu_custom_call.1} parent=1 // pred_region
      %s34 = ssub.s32 512, 512
      %35 = vsyncadd [#allocation6], %s34
      %s36 = sshll.u32 [#allocation5], 4
      %s37 = int_to_ptr.vmem [resolvable:$true] %s36
      %42 = dma.hbm_to_vmem [thread:$0]  %s1, 512, %s37, [#allocation6], 128, 128, 8
    $region9: #{tpu_custom_call.1} parent=1 // pred_fallthru
      _
    // Predicated region
    $region10: #{tpu_custom_call.1} parent=1 // pred_check
      _
    $region11: #{tpu_custom_call.1} parent=1 // pred_check_branch
      %44 = sbr.rel (0) target = $region13
    $region12: #{tpu_custom_call.1} parent=1 // pred_region
      %s46 = ssub.s32 128, 128
      %47 = vsyncadd [#allocation6], %s46
      %s48 = sshll.u32 [#allocation7], 4
      %s49 = int_to_ptr.vmem [resolvable:$true] %s48
      %54 = dma.hbm_to_vmem [thread:$0]  %s2, 128, %s49, [#allocation6], 64, 64, 4
    $region13: #{tpu_custom_call.1} parent=1 // pred_fallthru
      _
    // Predicated region
    $region14: #{tpu_custom_call.1} parent=1 // pred_check
      _
    $region15: #{tpu_custom_call.1} parent=1 // pred_check_branch
      %56 = sbr.rel (0) target = $region17
    $region16: #{tpu_custom_call.1} parent=1 // pred_region
      %s58 = ssub.s32 256, 256
      %59 = vsyncadd [#allocation9], %s58
      %s60 = sshll.u32 [#allocation8], 4
      %s61 = int_to_ptr.vmem [resolvable:$true] %s60
      %66 = dma.hbm_to_vmem [thread:$0]  %s3, 256, %s61, [#allocation9], 128, 128, 8
    $region17: #{tpu_custom_call.1} parent=1 // pred_fallthru
      _
    // Predicated region
    $region18: #{tpu_custom_call.1} parent=1 // pred_check
      _
    $region19: #{tpu_custom_call.1} parent=1 // pred_check_branch
      %68 = sbr.rel (0) target = $region21
    $region20: #{tpu_custom_call.1} parent=1 // pred_region
      %s70 = ssub.s32 256, 256
      %71 = vsyncadd [#allocation9], %s70
      %s72 = sshll.u32 [#allocation10], 4
      %s73 = int_to_ptr.vmem [resolvable:$true] %s72
      %78 = dma.hbm_to_vmem [thread:$0]  %s4, 256, %s73, [#allocation9], 128, 128, 8
    $region21: #{tpu_custom_call.1} parent=1 // pred_fallthru
      _
    // Predicated region
    $region22: #{tpu_custom_call.1} parent=1 // pred_check
      _
    $region23: #{tpu_custom_call.1} parent=1 // pred_check_branch
      %80 = sbr.rel (0) target = $region25
    $region24: #{tpu_custom_call.1} parent=1 // pred_region
      %s82 = ssub.s32 256, 256
      %83 = vsyncadd [#allocation12], %s82
      %s84 = sshll.u32 [#allocation11], 4
      %s85 = int_to_ptr.vmem [resolvable:$true] %s84
      %90 = dma.hbm_to_vmem [thread:$0]  %s5, 256, %s85, [#allocation12], 64, 64, 4
    $region25: #{tpu_custom_call.1} parent=1 // pred_fallthru
      _
    // Predicated region
    $region26: #{tpu_custom_call.1} parent=1 // pred_check
      _
    $region27: #{tpu_custom_call.1} parent=1 // pred_check_branch
      %92 = sbr.rel (0) target = $region29
    $region28: #{tpu_custom_call.1} parent=1 // pred_region
      %s94 = ssub.s32 256, 256
      %95 = vsyncadd [#allocation12], %s94
      %s96 = sshll.u32 [#allocation13], 4
      %s97 = int_to_ptr.vmem [resolvable:$true] %s96
      %102 = dma.hbm_to_vmem [thread:$0]  %s6, 256, %s97, [#allocation12], 128, 128, 8
    $region29: #{tpu_custom_call.1} parent=1 // pred_fallthru
      _
    // Predicated region
    $region30: #{tpu_custom_call.1} parent=1 // pred_check
      _
    $region31: #{tpu_custom_call.1} parent=1 // pred_check_branch
      %104 = sbr.rel (0) target = $region33
    $region32: #{tpu_custom_call.1} parent=1 // pred_region
      %s106 = ssub.s32 256, 256
      %107 = vsyncadd [#allocation15], %s106
      %s108 = sshll.u32 [#allocation14], 4
      %s109 = int_to_ptr.vmem [resolvable:$true] %s108
      %114 = dma.hbm_to_vmem [thread:$0]  %s7, 256, %s109, [#allocation15], 128, 128, 8
    $region33: #{tpu_custom_call.1} parent=1 // pred_fallthru
      _
    // Predicated region
    $region34: #{tpu_custom_call.1} parent=1 // pred_check
      _
    $region35: #{tpu_custom_call.1} parent=1 // pred_check_branch
      %116 = sbr.rel (0) target = $region37
    $region36: #{tpu_custom_call.1} parent=1 // pred_region
      %117 = dma.done [#allocation3], 512
    $region37: #{tpu_custom_call.1} parent=1 // pred_fallthru
      _
    // Predicated region
    $region38: #{tpu_custom_call.1} parent=1 // pred_check
      _
    $region39: #{tpu_custom_call.1} parent=1 // pred_check_branch
      %119 = sbr.rel (0) target = $region41
    $region40: #{tpu_custom_call.1} parent=1 // pred_region
      %120 = dma.done [#allocation6], 512
    $region41: #{tpu_custom_call.1} parent=1 // pred_fallthru
      _
    // Predicated region
    $region42: #{tpu_custom_call.1} parent=1 // pred_check
      _
    $region43: #{tpu_custom_call.1} parent=1 // pred_check_branch
      %122 = sbr.rel (0) target = $region45
    $region44: #{tpu_custom_call.1} parent=1 // pred_region
      %123 = dma.done [#allocation6], 128
    $region45: #{tpu_custom_call.1} parent=1 // pred_fallthru
      _
    // Predicated region
    $region46: #{tpu_custom_call.1} parent=1 // pred_check
      _
    $region47: #{tpu_custom_call.1} parent=1 // pred_check_branch
      %125 = sbr.rel (0) target = $region49
    $region48: #{tpu_custom_call.1} parent=1 // pred_region
      %126 = dma.done [#allocation9], 256
    $region49: #{tpu_custom_call.1} parent=1 // pred_fallthru
      _
    // Predicated region
    $region50: #{tpu_custom_call.1} parent=1 // pred_check
      _
    $region51: #{tpu_custom_call.1} parent=1 // pred_check_branch
      %128 = sbr.rel (0) target = $region53
    $region52: #{tpu_custom_call.1} parent=1 // pred_region
      %129 = dma.done [#allocation9], 256
    $region53: #{tpu_custom_call.1} parent=1 // pred_fallthru
      _
    // Predicated region
    $region54: #{tpu_custom_call.1} parent=1 // pred_check
      _
    $region55: #{tpu_custom_call.1} parent=1 // pred_check_branch
      %131 = sbr.rel (0) target = $region57
    $region56: #{tpu_custom_call.1} parent=1 // pred_region
      %132 = dma.done [#allocation12], 256
    $region57: #{tpu_custom_call.1} parent=1 // pred_fallthru
      _
    // Predicated region
    $region58: #{tpu_custom_call.1} parent=1 // pred_check
      _
    $region59: #{tpu_custom_call.1} parent=1 // pred_check_branch
      %134 = sbr.rel (0) target = $region61
    $region60: #{tpu_custom_call.1} parent=1 // pred_region
      %135 = dma.done [#allocation12], 256
    $region61: #{tpu_custom_call.1} parent=1 // pred_fallthru
      _
    // Predicated region
    $region62: #{tpu_custom_call.1} parent=1 // pred_check
      _
    $region63: #{tpu_custom_call.1} parent=1 // pred_check_branch
      %137 = sbr.rel (0) target = $region65
    $region64: #{tpu_custom_call.1} parent=1 // pred_region
      %138 = dma.done [#allocation15], 256
    $region65: #{tpu_custom_call.1} parent=1 // pred_fallthru
      _
    %v140 = vld [vmem:[#allocation7] sm:$0xf]
    %v141 = vld [vmem:[#allocation7 + $0x4] sm:$0xf]
    %v142 = vld [vmem:[#allocation11] sm:$0xf]
    %v143 = vld [vmem:[#allocation11 + $0x4] sm:$0xf]
    %v144 = vld [vmem:[#allocation11 + $0x8] sm:$0xf]
    %v145 = vld [vmem:[#allocation11 + $0xc] sm:$0xf]
    %v146 = vld [vmem:[#allocation8] sm:$0xff]
    %v147 = vld [vmem:[#allocation8 + $0x8] sm:$0xff]
    %v148 = vld [vmem:[#allocation10] sm:$0xff]
    %v149 = vld [vmem:[#allocation10 + $0x8] sm:$0xff]
    %v150 = vld [vmem:[#allocation13] sm:$0xff]
    %v151 = vld [vmem:[#allocation13 + $0x8] sm:$0xff]
    %v152 = vld [vmem:[#allocation14] sm:$0xff]
    %v153 = vld [vmem:[#allocation14 + $0x8] sm:$0xff]
    %v154 = vld [vmem:[#allocation5] sm:$0xff]
    %v155 = vld [vmem:[#allocation5 + $0x8] sm:$0xff]
    %v156 = vld [vmem:[#allocation5 + $0x10] sm:$0xff]
    %v157 = vld [vmem:[#allocation5 + $0x18] sm:$0xff]
    %v158 = vpack.c.bf16 %v155, %v154
    %v159 = vpack.c.bf16 %v157, %v156
    %v160 = vld [vmem:[#allocation2] sm:$0xff]
    %v161 = vld [vmem:[#allocation2 + $0x8] sm:$0xff]
    %v162 = vld [vmem:[#allocation2 + $0x10] sm:$0xff]
    %v163 = vld [vmem:[#allocation2 + $0x18] sm:$0xff]
    %v164 = vpack.c.bf16 %v161, %v160
    %v165 = vpack.c.bf16 %v163, %v162
    %v168 = vunpack.c.l.b16 %v140
    %v169 = vunpack.c.l.b16 %v141
    %v170 = vpack.c.b16 %v169, %v168
    %vm172 = vcmask 130048
    %v174 = vsel %vm172, %v164, 0
    %v177 = vsel %vm172, %v165, 0
    %179 = vmatprep.subr.bf16.mxu0 0
    %180 = vmatpush1.bf16.msra.mxu0 0
    %181 = vmatprep.subr.bf16.mxu0 0
    %182 = vmatpush1.bf16.msra.mxu0 0
    %183 = vmatprep.subr.bf16.mxu0 0
    %184 = vmatpush1.bf16.msra.mxu0 0
    %185 = vmatprep.subr.bf16.mxu0 0
    %186 = vmatpush1.bf16.msra.mxu0 0
    %187 = vmatprep.subr.bf16.mxu0 0
    %188 = vmatpush1.bf16.msra.mxu0 0
    %189 = vmatprep.subr.bf16.mxu0 0
    %190 = vmatpush1.bf16.msra.mxu0 0
    %191 = vmatprep.subr.bf16.mxu0 0
    %192 = vmatpush1.bf16.msra.mxu0 0
    %193 = vmatprep.subr.bf16.mxu0 0
    %194 = vmatpush1.bf16.msra.mxu0 %v170
    %195 = vmatprep.subr.bf16.mxu0 0
    %196 = vmatpush2.bf16.msra.mxu0 0
    %197 = vmatprep.subr.bf16.mxu0 0
    %198 = vmatpush2.bf16.msra.mxu0 0
    %199 = vmatprep.subr.bf16.mxu0 0
    %200 = vmatpush2.bf16.msra.mxu0 0
    %201 = vmatprep.subr.bf16.mxu0 0
    %202 = vmatpush2.bf16.msra.mxu0 0
    %203 = vmatprep.subr.bf16.mxu0 0
    %204 = vmatpush2.bf16.msra.mxu0 0
    %205 = vmatprep.subr.bf16.mxu0 0
    %206 = vmatpush2.bf16.msra.mxu0 0
    %207 = vmatprep.subr.bf16.mxu0 0
    %208 = vmatpush2.bf16.msra.mxu0 0
    %209 = vmatprep.subr.bf16.mxu0 0
    %210 = vmatpush2.bf16.msra.mxu0 0
    %211 = vmatprep.mubr.bf16.mxu0 0
    %212 = vmatmul.mubr.bf16.gmra.mxu0 %v174
    %v213 = vpop.f32.mrf.mxu0
    %v214 = vadd.f32 0.0, %v213
    %v215 = vpop.f32.mrf.mxu0
    %v216 = vpop.f32.mrf.mxu0
    %v217 = vadd.f32 0.0, %v216
    %v218 = vpop.f32.mrf.mxu0
    %219 = vmatprep.mubr.bf16.mxu0 0
    %220 = vmatmul.mubr.bf16.gmra.mxu0 %v177
    %v221 = vpop.f32.mrf.mxu0
    %v222 = vadd.f32 0.0, %v221
    %v223 = vpop.f32.mrf.mxu0
    %v224 = vpop.f32.mrf.mxu0
    %v225 = vadd.f32 0.0, %v224
    %v226 = vpop.f32.mrf.mxu0
    %227 = vdwg.mxu0
    %v228 = vpack.c.bf16 %v217, %v214
    %v229 = vpack.c.bf16 %v225, %v222
    %v231 = vsel %vm172, %v158, 0
    %233 = vmatprep.subr.bf16.mxu0 0
    %234 = vmatpush1.bf16.msra.mxu0 0
    %235 = vmatprep.subr.bf16.mxu0 0
    %236 = vmatpush1.bf16.msra.mxu0 0
    %237 = vmatprep.subr.bf16.mxu0 0
    %238 = vmatpush1.bf16.msra.mxu0 0
    %239 = vmatprep.subr.bf16.mxu0 0
    %240 = vmatpush1.bf16.msra.mxu0 0
    %241 = vmatprep.subr.bf16.mxu0 0
    %242 = vmatpush1.bf16.msra.mxu0 0
    %243 = vmatprep.subr.bf16.mxu0 0
    %244 = vmatpush1.bf16.msra.mxu0 0
    %245 = vmatprep.subr.bf16.mxu0 0
    %246 = vmatpush1.bf16.msra.mxu0 0
    %247 = vmatprep.subr.bf16.mxu0 0
    %248 = vmatpush1.bf16.msra.mxu0 %v228
    %249 = vmatprep.subr.bf16.mxu0 0
    %250 = vmatpush2.bf16.msra.mxu0 0
    %251 = vmatprep.subr.bf16.mxu0 0
    %252 = vmatpush2.bf16.msra.mxu0 0
    %253 = vmatprep.subr.bf16.mxu0 0
    %254 = vmatpush2.bf16.msra.mxu0 0
    %255 = vmatprep.subr.bf16.mxu0 0
    %256 = vmatpush2.bf16.msra.mxu0 0
    %257 = vmatprep.subr.bf16.mxu0 0
    %258 = vmatpush2.bf16.msra.mxu0 0
    %259 = vmatprep.subr.bf16.mxu0 0
    %260 = vmatpush2.bf16.msra.mxu0 0
    %261 = vmatprep.subr.bf16.mxu0 0
    %262 = vmatpush2.bf16.msra.mxu0 0
    %263 = vmatprep.subr.bf16.mxu0 0
    %264 = vmatpush2.bf16.msra.mxu0 0
    %265 = vmatprep.mubr.bf16.mxu0 0
    %266 = vmatmul.mubr.bf16.gmra.mxu0 %v231
    %v267 = vpop.f32.mrf.mxu0
    %v268 = vadd.f32 0.0, %v267
    %v269 = vpop.f32.mrf.mxu0
    %v270 = vpop.f32.mrf.mxu0
    %v271 = vadd.f32 0.0, %v270
    %v272 = vpop.f32.mrf.mxu0
    %273 = vdwg.mxu0
    %v275 = vsel %vm172, %v159, 0
    %277 = vmatprep.subr.bf16.mxu0 0
    %278 = vmatpush1.bf16.msra.mxu0 0
    %279 = vmatprep.subr.bf16.mxu0 0
    %280 = vmatpush1.bf16.msra.mxu0 0
    %281 = vmatprep.subr.bf16.mxu0 0
    %282 = vmatpush1.bf16.msra.mxu0 0
    %283 = vmatprep.subr.bf16.mxu0 0
    %284 = vmatpush1.bf16.msra.mxu0 0
    %285 = vmatprep.subr.bf16.mxu0 0
    %286 = vmatpush1.bf16.msra.mxu0 0
    %287 = vmatprep.subr.bf16.mxu0 0
    %288 = vmatpush1.bf16.msra.mxu0 0
    %289 = vmatprep.subr.bf16.mxu0 0
    %290 = vmatpush1.bf16.msra.mxu0 0
    %291 = vmatprep.subr.bf16.mxu0 0
    %292 = vmatpush1.bf16.msra.mxu0 %v229
    %293 = vmatprep.subr.bf16.mxu0 0
    %294 = vmatpush2.bf16.msra.mxu0 0
    %295 = vmatprep.subr.bf16.mxu0 0
    %296 = vmatpush2.bf16.msra.mxu0 0
    %297 = vmatprep.subr.bf16.mxu0 0
    %298 = vmatpush2.bf16.msra.mxu0 0
    %299 = vmatprep.subr.bf16.mxu0 0
    %300 = vmatpush2.bf16.msra.mxu0 0
    %301 = vmatprep.subr.bf16.mxu0 0
    %302 = vmatpush2.bf16.msra.mxu0 0
    %303 = vmatprep.subr.bf16.mxu0 0
    %304 = vmatpush2.bf16.msra.mxu0 0
    %305 = vmatprep.subr.bf16.mxu0 0
    %306 = vmatpush2.bf16.msra.mxu0 0
    %307 = vmatprep.subr.bf16.mxu0 0
    %308 = vmatpush2.bf16.msra.mxu0 0
    %309 = vmatprep.mubr.bf16.mxu0 0
    %310 = vmatmul.mubr.bf16.gmra.mxu0 %v275
    %v311 = vpop.f32.mrf.mxu0
    %v312 = vadd.f32 0.0, %v311
    %v313 = vpop.f32.mrf.mxu0
    %v314 = vpop.f32.mrf.mxu0
    %v315 = vadd.f32 0.0, %v314
    %v316 = vpop.f32.mrf.mxu0
    %317 = vdwg.mxu0
    %v318 = vmul.f32 %v268, %v146
    %v319 = vmul.f32 %v271, %v147
    %v320 = vmul.f32 %v312, %v146
    %v321 = vmul.f32 %v315, %v147
    %v322 = vadd.f32 %v318, %v148
    %v323 = vadd.f32 %v319, %v149
    %v324 = vadd.f32 %v320, %v148
    %v325 = vadd.f32 %v321, %v149
    %v326 = vmax.f32 %v322, 0.0
    %v327 = vmax.f32 %v323, 0.0
    %v328 = vmax.f32 %v324, 0.0
    %v329 = vmax.f32 %v325, 0.0
    %v330 = vpack.c.bf16 %v327, %v326
    %v331 = vpack.c.bf16 %v329, %v328
    %v336 = vunpack.c.l.b16 %v142
    %v337 = vunpack.c.l.b16 %v143
    %v338 = vunpack.c.l.b16 %v144
    %v339 = vunpack.c.l.b16 %v145
    %v340 = vpack.c.b16 %v337, %v336
    %v341 = vpack.c.b16 %v339, %v338
    %vm344 = vcmask 261120
    %v346 = vsel %vm344, %v330, 0
    %v349 = vsel %vm344, %v331, 0
    %351 = vmatprep.subr.bf16.mxu0 0
    %352 = vmatpush1.bf16.msra.mxu0 0
    %353 = vmatprep.subr.bf16.mxu0 0
    %354 = vmatpush1.bf16.msra.mxu0 0
    %355 = vmatprep.subr.bf16.mxu0 0
    %356 = vmatpush1.bf16.msra.mxu0 0
    %357 = vmatprep.subr.bf16.mxu0 0
    %358 = vmatpush1.bf16.msra.mxu0 0
    %359 = vmatprep.subr.bf16.mxu0 0
    %360 = vmatpush1.bf16.msra.mxu0 0
    %361 = vmatprep.subr.bf16.mxu0 0
    %362 = vmatpush1.bf16.msra.mxu0 0
    %363 = vmatprep.subr.bf16.mxu0 0
    %364 = vmatpush1.bf16.msra.mxu0 %v341
    %365 = vmatprep.subr.bf16.mxu0 0
    %366 = vmatpush1.bf16.msra.mxu0 %v340
    %367 = vmatprep.subr.bf16.mxu0 0
    %368 = vmatpush2.bf16.msra.mxu0 0
    %369 = vmatprep.subr.bf16.mxu0 0
    %370 = vmatpush2.bf16.msra.mxu0 0
    %371 = vmatprep.subr.bf16.mxu0 0
    %372 = vmatpush2.bf16.msra.mxu0 0
    %373 = vmatprep.subr.bf16.mxu0 0
    %374 = vmatpush2.bf16.msra.mxu0 0
    %375 = vmatprep.subr.bf16.mxu0 0
    %376 = vmatpush2.bf16.msra.mxu0 0
    %377 = vmatprep.subr.bf16.mxu0 0
    %378 = vmatpush2.bf16.msra.mxu0 0
    %379 = vmatprep.subr.bf16.mxu0 0
    %380 = vmatpush2.bf16.msra.mxu0 0
    %381 = vmatprep.subr.bf16.mxu0 0
    %382 = vmatpush2.bf16.msra.mxu0 0
    %383 = vmatprep.mubr.bf16.mxu0 0
    %384 = vmatmul.mubr.bf16.gmra.mxu0 %v346
    %v385 = vpop.f32.mrf.mxu0
    %v386 = vadd.f32 0.0, %v385
    %v387 = vpop.f32.mrf.mxu0
    %v388 = vpop.f32.mrf.mxu0
    %v389 = vadd.f32 0.0, %v388
    %v390 = vpop.f32.mrf.mxu0
    %391 = vmatprep.mubr.bf16.mxu0 0
    %392 = vmatmul.mubr.bf16.gmra.mxu0 %v349
    %v393 = vpop.f32.mrf.mxu0
    %v394 = vadd.f32 0.0, %v393
    %v395 = vpop.f32.mrf.mxu0
    %v396 = vpop.f32.mrf.mxu0
    %v397 = vadd.f32 0.0, %v396
    %v398 = vpop.f32.mrf.mxu0
    %399 = vdwg.mxu0
    %v400 = vpack.c.bf16 %v389, %v386
    %v401 = vpack.c.bf16 %v397, %v394
    %402 = vmatprep.subr.bf16.mxu0 0
    %403 = vmatpush1.bf16.msra.mxu0 0
    %404 = vmatprep.subr.bf16.mxu0 0
    %405 = vmatpush1.bf16.msra.mxu0 0
    %406 = vmatprep.subr.bf16.mxu0 0
    %407 = vmatpush1.bf16.msra.mxu0 0
    %408 = vmatprep.subr.bf16.mxu0 0
    %409 = vmatpush1.bf16.msra.mxu0 0
    %410 = vmatprep.subr.bf16.mxu0 0
    %411 = vmatpush1.bf16.msra.mxu0 0
    %412 = vmatprep.subr.bf16.mxu0 0
    %413 = vmatpush1.bf16.msra.mxu0 0
    %414 = vmatprep.subr.bf16.mxu0 0
    %415 = vmatpush1.bf16.msra.mxu0 0
    %416 = vmatprep.subr.bf16.mxu0 0
    %417 = vmatpush1.bf16.msra.mxu0 %v400
    %418 = vmatprep.subr.bf16.mxu0 0
    %419 = vmatpush2.bf16.msra.mxu0 0
    %420 = vmatprep.subr.bf16.mxu0 0
    %421 = vmatpush2.bf16.msra.mxu0 0
    %422 = vmatprep.subr.bf16.mxu0 0
    %423 = vmatpush2.bf16.msra.mxu0 0
    %424 = vmatprep.subr.bf16.mxu0 0
    %425 = vmatpush2.bf16.msra.mxu0 0
    %426 = vmatprep.subr.bf16.mxu0 0
    %427 = vmatpush2.bf16.msra.mxu0 0
    %428 = vmatprep.subr.bf16.mxu0 0
    %429 = vmatpush2.bf16.msra.mxu0 0
    %430 = vmatprep.subr.bf16.mxu0 0
    %431 = vmatpush2.bf16.msra.mxu0 0
    %432 = vmatprep.subr.bf16.mxu0 0
    %433 = vmatpush2.bf16.msra.mxu0 0
    %434 = vmatprep.mubr.bf16.mxu0 0
    %435 = vmatmul.mubr.bf16.gmra.mxu0 %v231
    %v436 = vpop.f32.mrf.mxu0
    %v437 = vadd.f32 0.0, %v436
    %v438 = vpop.f32.mrf.mxu0
    %v439 = vpop.f32.mrf.mxu0
    %v440 = vadd.f32 0.0, %v439
    %v441 = vpop.f32.mrf.mxu0
    %442 = vdwg.mxu0
    %443 = vmatprep.subr.bf16.mxu0 0
    %444 = vmatpush1.bf16.msra.mxu0 0
    %445 = vmatprep.subr.bf16.mxu0 0
    %446 = vmatpush1.bf16.msra.mxu0 0
    %447 = vmatprep.subr.bf16.mxu0 0
    %448 = vmatpush1.bf16.msra.mxu0 0
    %449 = vmatprep.subr.bf16.mxu0 0
    %450 = vmatpush1.bf16.msra.mxu0 0
    %451 = vmatprep.subr.bf16.mxu0 0
    %452 = vmatpush1.bf16.msra.mxu0 0
    %453 = vmatprep.subr.bf16.mxu0 0
    %454 = vmatpush1.bf16.msra.mxu0 0
    %455 = vmatprep.subr.bf16.mxu0 0
    %456 = vmatpush1.bf16.msra.mxu0 0
    %457 = vmatprep.subr.bf16.mxu0 0
    %458 = vmatpush1.bf16.msra.mxu0 %v401
    %459 = vmatprep.subr.bf16.mxu0 0
    %460 = vmatpush2.bf16.msra.mxu0 0
    %461 = vmatprep.subr.bf16.mxu0 0
    %462 = vmatpush2.bf16.msra.mxu0 0
    %463 = vmatprep.subr.bf16.mxu0 0
    %464 = vmatpush2.bf16.msra.mxu0 0
    %465 = vmatprep.subr.bf16.mxu0 0
    %466 = vmatpush2.bf16.msra.mxu0 0
    %467 = vmatprep.subr.bf16.mxu0 0
    %468 = vmatpush2.bf16.msra.mxu0 0
    %469 = vmatprep.subr.bf16.mxu0 0
    %470 = vmatpush2.bf16.msra.mxu0 0
    %471 = vmatprep.subr.bf16.mxu0 0
    %472 = vmatpush2.bf16.msra.mxu0 0
    %473 = vmatprep.subr.bf16.mxu0 0
    %474 = vmatpush2.bf16.msra.mxu0 0
    %475 = vmatprep.mubr.bf16.mxu0 0
    %476 = vmatmul.mubr.bf16.gmra.mxu0 %v275
    %v477 = vpop.f32.mrf.mxu0
    %v478 = vadd.f32 0.0, %v477
    %v479 = vpop.f32.mrf.mxu0
    %v480 = vpop.f32.mrf.mxu0
    %v481 = vadd.f32 0.0, %v480
    %v482 = vpop.f32.mrf.mxu0
    %483 = vdwg.mxu0
    %v484 = vmul.f32 %v437, %v150
    %v485 = vmul.f32 %v440, %v151
    %v486 = vmul.f32 %v478, %v150
    %v487 = vmul.f32 %v481, %v151
    %v488 = vadd.f32 %v484, %v152
    %v489 = vadd.f32 %v485, %v153
    %v490 = vadd.f32 %v486, %v152
    %v491 = vadd.f32 %v487, %v153
    %v492 = vmax.f32 %v488, 0.0
    %v493 = vmax.f32 %v489, 0.0
    %v494 = vmax.f32 %v490, 0.0
    %v495 = vmax.f32 %v491, 0.0
    %496 = vst.msk [vmem:[#allocation16] sm:$0xff] %vm344, %v492
    %497 = vst.msk [vmem:[#allocation16 + $0x8] sm:$0xff] %vm344, %v493
    %498 = vst.msk [vmem:[#allocation16 + $0x10] sm:$0xff] %vm344, %v494
    %499 = vst.msk [vmem:[#allocation16 + $0x18] sm:$0xff] %vm344, %v495
    // Predicated region
    $region66: #{tpu_custom_call.1} parent=1 // pred_check
      _
    $region67: #{tpu_custom_call.1} parent=1 // pred_check_branch
      %501 = sbr.rel (0) target = $region69
    $region68: #{tpu_custom_call.1} parent=1 // pred_region
      %s503 = ssub.s32 512, 512
      %504 = vsyncadd [#allocation4], %s503
      %s505 = sshll.u32 [#allocation16], 4
      %s506 = int_to_ptr.vmem [resolvable:$true] %s505
      %511 = dma.vmem_to_hbm [thread:$0]  %s506, 512, %s8, [#allocation4], 128, 128, 8
    $region69: #{tpu_custom_call.1} parent=1 // pred_fallthru
      _
    // Predicated region
    $region70: #{tpu_custom_call.1} parent=1 // pred_check
      _
    $region71: #{tpu_custom_call.1} parent=1 // pred_check_branch
      %513 = sbr.rel (0) target = $region73
    $region72: #{tpu_custom_call.1} parent=1 // pred_region
      %514 = dma.done [#allocation4], 512
    $region73: #{tpu_custom_call.1} parent=1 // pred_fallthru
      _
    %515 = vsyncpa [#allocation3], 1
    %516 = vsyncpa [#allocation6], 1
    %517 = vsyncpa [#allocation9], 1
    %518 = vsyncpa [#allocation12], 1
    %519 = vsyncpa [#allocation15], 1
    %520 = vsyncpa [#allocation4], 1

</llo_original>
